<compile_context>
chip_gen: v7x
topology: tpu7x:2x2x1
jax: 0.10.0
libtpu: 0.0.40
codegen_flags: <defaults>
</compile_context>

<pallas_src>
import jax
import jax.numpy as jnp
from jax.experimental import pallas as pl
from jax.experimental.pallas import tpu as pltpu


def _round_up(n, m):
    return (n + m - 1) // m * m


def _choose_tb(b_pad):
    """Largest batch tile <= 128, multiple of 8, dividing b_pad, preferring >=2 grid steps."""
    candidates = [tb for tb in range(8, min(128, b_pad) + 1, 8) if b_pad % tb == 0]
    if not candidates:
        return b_pad
    multi = [tb for tb in candidates if b_pad // tb >= 2]
    return max(multi) if multi else max(candidates)


def _choose_ts(s, tb, f, itemsize, target_tile_bytes=2 * 1024 * 1024):
    """Sequence chunk: divides S, multiple of 8 (or == S), x tile near the DMA sweet spot."""
    if s <= 8 or tb * s * f * itemsize <= target_tile_bytes:
        return s
    best = None
    for ts in range(8, s + 1, 8):
        if s % ts == 0 and tb * ts * f * itemsize <= target_tile_bytes:
            best = ts
    if best is not None:
        return best
    for ts in range(8, s + 1, 8):          # smallest valid divisor as fallback
        if s % ts == 0:
            return ts
    return s                               # no multiple-of-8 divisor -> full S


def _vmem_ceiling_bytes():
    """Per-generation VMEM ceiling (85% of physical), with a safe fallback."""
    try:
        info = pltpu.get_tpu_info()
        cap = getattr(info, "vmem_capacity_bytes", None)
        if cap:
            return int(cap * 0.85)
    except Exception:
        pass
    return 48 * 1024 * 1024                # safe on v5e / v6e / v7x


def _fused_classifier_kernel(x_ref, w_ref, b_ref, out_ref, acc_ref):
    """Grid = (batch tiles, seq chunks).  Accumulate sum over S, then one MXU matmul.

    Shapes (VMEM):
      x_ref   : (TB, TS, F)     unpadded trajectory chunk
      w_ref   : (F,  C_pad)     fused weight  (W_enc @ W_head) / S   (C zero-padded)
      b_ref   : (1,  C_pad)     fused bias    b_enc @ W_head + b_head
      out_ref : (TB, C_pad)
      acc_ref : (TB, F) f32     running sum over the sequence axis
    """
    k = pl.program_id(1)

    @pl.when(k == 0)
    def _():
        acc_ref[...] = jnp.zeros_like(acc_ref)

    # accumulate this sequence chunk (1/S is folded into w_ref)
    acc_ref[...] += jnp.sum(x_ref[...].astype(jnp.float32), axis=1)

    @pl.when(k == pl.num_programs(1) - 1)
    def _():
        logits = jnp.dot(acc_ref[...], w_ref[...],
                         preferred_element_type=jnp.float32)      # (TB, C_pad)
        out_ref[...] = (logits + b_ref[...]).astype(out_ref.dtype)


def trajectory_classifier(x, w_enc, b_enc, w_head, b_head):
    """Offline fusion of the two linears + batch/seq tiled Pallas kernel."""
    B, S, F = x.shape
    C = w_head.shape[1]
    itemsize = jnp.dtype(x.dtype).itemsize

    # ---- offline fusion (valid: encoder is a pure Linear); fold 1/S into W ----
    w_fused = jnp.dot(w_enc.astype(jnp.float32), w_head.astype(jnp.float32),
                      preferred_element_type=jnp.float32) * (1.0 / S)       # (F, C)
    b_fused = (jnp.dot(b_enc.astype(jnp.float32), w_head.astype(jnp.float32),
                       preferred_element_type=jnp.float32)
               + b_head.astype(jnp.float32))                                # (C,)

    # ---- layout: pad only the tiny weight/bias lane dim; batch to multiple of 8 ----
    C_pad = _round_up(C, 128)
    B_pad = _round_up(B, 8)
    x_in = x if B_pad == B else jnp.zeros((B_pad, S, F), x.dtype).at[:B].set(x)

    TB = _choose_tb(B_pad)
    TS = _choose_ts(S, TB, F, itemsize)

    w_p = jnp.zeros((F, C_pad), jnp.float32).at[:, :C].set(w_fused)
    b_p = jnp.zeros((1, C_pad), jnp.float32).at[0, :C].set(b_fused)

    grid = (B_pad // TB, S // TS)

    # VMEM budget from the real double-buffered footprint (+25% headroom)
    footprint = (2 * TB * TS * F * itemsize        # x tile, double-buffered
                 + 2 * TB * C_pad * 4              # out tile, double-buffered
                 + 2 * F * C_pad * 4               # fused weight
                 + 2 * C_pad * 4                   # fused bias
                 + TB * F * 4)                     # accumulator scratch
    vmem_limit = min(max(int(footprint * 1.25), 4 * 1024 * 1024),
                     _vmem_ceiling_bytes())

    out_p = pl.pallas_call(
        _fused_classifier_kernel,
        out_shape=jax.ShapeDtypeStruct((B_pad, C_pad), jnp.float32),
        grid_spec=pltpu.PrefetchScalarGridSpec(
            num_scalar_prefetch=0,
            grid=grid,
            in_specs=[
                pl.BlockSpec((TB, TS, F), lambda i, k: (i, k, 0)),   # stream x
                pl.BlockSpec((F, C_pad), lambda i, k: (0, 0)),       # resident weight
                pl.BlockSpec((1, C_pad), lambda i, k: (0, 0)),       # resident bias
            ],
            out_specs=pl.BlockSpec((TB, C_pad), lambda i, k: (i, 0)),  # lane-dense out
            scratch_shapes=[pltpu.VMEM((TB, F), jnp.float32)],
        ),
        compiler_params=pltpu.CompilerParams(
            dimension_semantics=("parallel", "arbitrary"),
            vmem_limit_bytes=vmem_limit,
        ),
    )(x_in, w_p, b_p)

    # strip padding
    return out_p[:B, :C]


def _reference(x, w_enc, b_enc, w_head, b_head):
    """Plain-JAX reference mirroring the PyTorch forward (no fusion)."""
    enc = jnp.einsum('bsf,fd->bsd', x, w_enc) + b_enc
    seq_repr = enc.mean(axis=1)
    return seq_repr @ w_head + b_head


if __name__ == "__main__":
    # Small shapes consistent with the module's forward:
    #   x: (batch, seq_len, feature_dim), d_model=32, num_classes=2
    B, S, F = 2, 8, 16
    D = 32            # d_model
    C = 2             # num_classes

    key = jax.random.PRNGKey(0)
    kx, kwe, kbe, kwh, kbh = jax.random.split(key, 5)

    x      = jax.random.normal(kx,  (B, S, F), dtype=jnp.float32)
    w_enc  = jax.random.normal(kwe, (F, D),    dtype=jnp.float32) * 0.1
    b_enc  = jax.random.normal(kbe, (D,),      dtype=jnp.float32) * 0.1
    w_head = jax.random.normal(kwh, (D, C),    dtype=jnp.float32) * 0.1
    b_head = jax.random.normal(kbh, (C,),      dtype=jnp.float32) * 0.1

    logits = trajectory_classifier(x, w_enc, b_enc, w_head, b_head)
    logits = jax.block_until_ready(logits)

    ref = _reference(x, w_enc, b_enc, w_head, b_head)
    assert logits.shape == (B, C)
    assert jnp.allclose(logits, ref, atol=1e-4, rtol=1e-4), "mismatch vs reference"

    print("KERNEL_OK")
</pallas_src>

<mosaic_0001>
module attributes {stable_mosaic.version = 11 : i64} {
  func.func @_fused_classifier_kernel(%arg0: i32, %arg1: i32, %arg2: memref<8x8x16xf32, #tpu.memory_space<vmem>>, %arg3: memref<16x128xf32, #tpu.memory_space<vmem>>, %arg4: memref<1x128xf32, #tpu.memory_space<vmem>>, %arg5: memref<8x128xf32, #tpu.memory_space<vmem>>, %arg6: memref<8x16xf32, #tpu.memory_space<vmem>>) attributes {dimension_semantics = [#tpu.dimension_semantics<parallel>, #tpu.dimension_semantics<arbitrary>], iteration_bounds = array<i64: 1, 1>, scalar_prefetch = 0 : i64, scratch_operands = 1 : i64, tpu.core_type = #tpu.core_type<tc>, window_params = [{transform_indices = @transform_0, window_bounds = array<i64: 8, 8, 16>}, {pipeline_mode = #tpu.pipeline_mode<synchronous>, transform_indices = @transform_1, window_bounds = array<i64: 16, 128>}, {pipeline_mode = #tpu.pipeline_mode<synchronous>, transform_indices = @transform_2, window_bounds = array<i64: 1, 128>}, {transform_indices = @transform_3, window_bounds = array<i64: 8, 128>}]} {
    %c0_i32 = arith.constant 0 : i32
    %0 = arith.cmpi eq, %arg1, %c0_i32 : i32
    %1 = arith.extui %0 : i1 to i32
    %c0_i32_0 = arith.constant 0 : i32
    %2 = arith.cmpi ne, %1, %c0_i32_0 : i32
    scf.if %2 {
      %cst_9 = arith.constant 0.000000e+00 : f32
      %11 = vector.broadcast %cst_9 : f32 to vector<8x16xf32>
      %c0_10 = arith.constant 0 : index
      %c0_11 = arith.constant 0 : index
      %12 = vector.load %arg6[%c0_10, %c0_11] : memref<8x16xf32, #tpu.memory_space<vmem>>, vector<8x16xf32>
      tpu.vector_store %arg6[%c0_10, %c0_11], %11 {strides = array<i32>} : memref<8x16xf32, #tpu.memory_space<vmem>>, vector<8x16xf32>,
    } else {
    }
    %c0 = arith.constant 0 : index
    %c0_1 = arith.constant 0 : index
    %3 = vector.load %arg6[%c0, %c0_1] : memref<8x16xf32, #tpu.memory_space<vmem>>, vector<8x16xf32>
    %c0_2 = arith.constant 0 : index
    %c0_3 = arith.constant 0 : index
    %c0_4 = arith.constant 0 : index
    %4 = vector.load %arg2[%c0_2, %c0_3, %c0_4] : memref<8x8x16xf32, #tpu.memory_space<vmem>>, vector<8x8x16xf32>
    %cst = arith.constant dense<0.000000e+00> : vector<8x16xf32>
    %5 = vector.multi_reduction <add>, %4, %cst [1] : vector<8x8x16xf32> to vector<8x16xf32>
    %6 = arith.addf %3, %5 : vector<8x16xf32>
    %c0_5 = arith.constant 0 : index
    %c0_6 = arith.constant 0 : index
    %7 = vector.load %arg6[%c0_5, %c0_6] : memref<8x16xf32, #tpu.memory_space<vmem>>, vector<8x16xf32>
    tpu.vector_store %arg6[%c0_5, %c0_6], %6 {strides = array<i32>} : memref<8x16xf32, #tpu.memory_space<vmem>>, vector<8x16xf32>,
    %c0_i32_7 = arith.constant 0 : i32
    %8 = arith.cmpi eq, %arg1, %c0_i32_7 : i32
    %9 = arith.extui %8 : i1 to i32
    %c0_i32_8 = arith.constant 0 : i32
    %10 = arith.cmpi ne, %9, %c0_i32_8 : i32
    scf.if %10 {
      %c0_9 = arith.constant 0 : index
      %c0_10 = arith.constant 0 : index
      %11 = vector.load %arg6[%c0_9, %c0_10] : memref<8x16xf32, #tpu.memory_space<vmem>>, vector<8x16xf32>
      %c0_11 = arith.constant 0 : index
      %c0_12 = arith.constant 0 : index
      %12 = vector.load %arg3[%c0_11, %c0_12] : memref<16x128xf32, #tpu.memory_space<vmem>>, vector<16x128xf32>
      %cst_13 = arith.constant dense<0.000000e+00> : vector<8x128xf32>
      %13 = tpu.matmul %11, %12, %cst_13 {dimension_numbers = #tpu.dot_dimension_numbers<[1], [0], [0], [1], [0, 0, 1, 1], [], []>} : vector<8x16xf32>, vector<16x128xf32>, vector<8x128xf32> -> vector<8x128xf32>
      %c0_14 = arith.constant 0 : index
      %c0_15 = arith.constant 0 : index
      %14 = vector.load %arg4[%c0_14, %c0_15] : memref<1x128xf32, #tpu.memory_space<vmem>>, vector<1x128xf32>
      %15 = vector.broadcast %14 : vector<1x128xf32> to vector<8x128xf32>
      %16 = arith.addf %13, %15 : vector<8x128xf32>
      %c0_16 = arith.constant 0 : index
      %c0_17 = arith.constant 0 : index
      %17 = vector.load %arg5[%c0_16, %c0_17] : memref<8x128xf32, #tpu.memory_space<vmem>>, vector<8x128xf32>
      tpu.vector_store %arg5[%c0_16, %c0_17], %16 {strides = array<i32>} : memref<8x128xf32, #tpu.memory_space<vmem>>, vector<8x128xf32>,
    } else {
    }
    return
  }
  func.func @transform_0(%arg0: i32, %arg1: i32) -> (i32, i32, i32) {
    %c0_i32 = arith.constant 0 : i32
    %c0_i32_0 = arith.constant 0 : i32
    return %arg0, %arg1, %c0_i32 : i32, i32, i32
  }
  func.func @transform_1(%arg0: i32, %arg1: i32) -> (i32, i32) {
    %c0_i32 = arith.constant 0 : i32
    %c0_i32_0 = arith.constant 0 : i32
    %c0_i32_1 = arith.constant 0 : i32
    return %c0_i32, %c0_i32_0 : i32, i32
  }
  func.func @transform_2(%arg0: i32, %arg1: i32) -> (i32, i32) {
    %c0_i32 = arith.constant 0 : i32
    %c0_i32_0 = arith.constant 0 : i32
    %c0_i32_1 = arith.constant 0 : i32
    return %c0_i32, %c0_i32_0 : i32, i32
  }
  func.func @transform_3(%arg0: i32, %arg1: i32) -> (i32, i32) {
    %c0_i32 = arith.constant 0 : i32
    %c0_i32_0 = arith.constant 0 : i32
    return %arg0, %c0_i32 : i32, i32
  }
}

</mosaic_0001>

<llo_original>
// kernel: tpu_custom_call.1
$region0: #{tpu_custom_call.1}
  #allocation0 [shape = 'u32[]', space=smem, size = 0x4, offset = 0x4, fixed_abs, tag = 'smem constant byte address 0x4 - core index']
  #allocation1 [shape = 'u32[144,128]{1,0:T(1,128)}', space=vmem, size = 0x12000, scoped, tag = 'internal scratch']
  #allocation2 [shape = 'f32[8,16]{1,0:T(8,128)}', space=vmem, size = 0x1000, scoped, tag = 'scratch operand']
  %s0 = inlined_call_operand.hbm [shape: f32[8,8,16], index: 0, kind: input, shape index: {}]
  %s1 = inlined_call_operand.hbm [shape: f32[16,128], index: 1, kind: input, shape index: {}]
  %s2 = inlined_call_operand.vmem [shape: f32[1,128], index: 2, kind: input, shape index: {}]
  %s3 = inlined_call_operand.hbm [shape: f32[8,128], index: 3, kind: output, shape index: {}]
  %s4 = sld [smem:[#allocation0]]
  $region38: #{tpu_custom_call.1} parent=0
    _
  %s6 = ssub.s32 1, %s4
  %s7 = scalar_select 0, %s6, %s4
  $region1: #{tpu_custom_call.1} parent=0
    #allocation3 [shape = 'u8[32768]{0}', space=vmem, size = 0x8000, scoped, tag = 'input window, operand 0, single buffered']
    #allocation4 [shape = 's32[1]{0}', space=sflag, size = 0x4, scoped, tag = 'scoped memory for tpu_custom_call.1']
    #allocation5 [shape = 's32[1]{0}', space=sflag, size = 0x4, scoped, tag = 'scoped memory for tpu_custom_call.1']
    #allocation6 [shape = 'u8[8192]{0}', space=vmem, size = 0x2000, scoped, tag = 'input window, operand 1, single buffered']
    #allocation7 [shape = 's32[1]{0}', space=sflag, size = 0x4, scoped, tag = 'scoped memory for tpu_custom_call.1']
    #allocation8 [shape = 'u8[4096]{0}', space=vmem, size = 0x1000, scoped, tag = 'output window, operand 0, single buffered']
    %8 = vsyncpa [#allocation4], 0
    %9 = vsyncpa [#allocation7], 0
    %10 = vsyncpa [#allocation5], 0
    // Predicated region
    $region2: #{tpu_custom_call.1} parent=1 // pred_check
      _
    $region3: #{tpu_custom_call.1} parent=1 // pred_check_branch
      %12 = sbr.rel (0) target = $region5
    $region4: #{tpu_custom_call.1} parent=1 // pred_region
      %s14 = ssub.s32 1024, 1024
      %15 = vsyncadd [#allocation4], %s14
      %s16 = sshll.u32 [#allocation3], 4
      %s17 = int_to_ptr.vmem [resolvable:$true] %s16
      %22 = dma.hbm_to_vmem [thread:$0]  %s0, 1024, %s17, [#allocation4], 128, 128, 8
    $region5: #{tpu_custom_call.1} parent=1 // pred_fallthru
      _
    // Predicated region
    $region6: #{tpu_custom_call.1} parent=1 // pred_check
      _
    $region7: #{tpu_custom_call.1} parent=1 // pred_check_branch
      %24 = sbr.rel (0) target = $region9
    $region8: #{tpu_custom_call.1} parent=1 // pred_region
      %s26 = ssub.s32 256, 256
      %27 = vsyncadd [#allocation7], %s26
      %s28 = sshll.u32 [#allocation6], 4
      %s29 = int_to_ptr.vmem [resolvable:$true] %s28
      %34 = dma.hbm_to_vmem [thread:$0]  %s1, 256, %s29, [#allocation7], 128, 128, 8
    $region9: #{tpu_custom_call.1} parent=1 // pred_fallthru
      _
    // Predicated region
    $region10: #{tpu_custom_call.1} parent=1 // pred_check
      _
    $region11: #{tpu_custom_call.1} parent=1 // pred_check_branch
      %36 = sbr.rel (0) target = $region13
    $region12: #{tpu_custom_call.1} parent=1 // pred_region
      _
    $region13: #{tpu_custom_call.1} parent=1 // pred_fallthru
      _
    // Predicated region
    $region14: #{tpu_custom_call.1} parent=1 // pred_check
      _
    $region15: #{tpu_custom_call.1} parent=1 // pred_check_branch
      %38 = sbr.rel (0) target = $region17
    $region16: #{tpu_custom_call.1} parent=1 // pred_region
      %39 = dma.done [#allocation4], 1024
    $region17: #{tpu_custom_call.1} parent=1 // pred_fallthru
      _
    // Predicated region
    $region18: #{tpu_custom_call.1} parent=1 // pred_check
      _
    $region19: #{tpu_custom_call.1} parent=1 // pred_check_branch
      %41 = sbr.rel (0) target = $region21
    $region20: #{tpu_custom_call.1} parent=1 // pred_region
      %42 = dma.done [#allocation7], 256
    $region21: #{tpu_custom_call.1} parent=1 // pred_fallthru
      _
    %p43 = scmp.eq.s32.totalorder 0, 0
    // Predicated region
    $region22: #{tpu_custom_call.1} parent=1 // pred_check
      %p44 = pneg %p43
    $region23: #{tpu_custom_call.1} parent=1 // pred_check_branch
      %46 = sbr.rel (%p44) target = $region25
    $region24: #{tpu_custom_call.1} parent=1 // pred_region
      %vm47 = vcmask 130048
      %48 = vst.msk [vmem:[#allocation2] sm:$0xff] %vm47, 0.0
    $region25: #{tpu_custom_call.1} parent=1 // pred_fallthru
      _
    %v49 = vld [vmem:[#allocation2] sm:$0xff]
    %v50 = vld [vmem:[#allocation3] sm:$0xff]
    %v51 = vld [vmem:[#allocation3 + $0x8] sm:$0xff]
    %v52 = vld [vmem:[#allocation3 + $0x10] sm:$0xff]
    %v53 = vld [vmem:[#allocation3 + $0x18] sm:$0xff]
    %v54 = vld [vmem:[#allocation3 + $0x20] sm:$0xff]
    %v55 = vld [vmem:[#allocation3 + $0x28] sm:$0xff]
    %v56 = vld [vmem:[#allocation3 + $0x30] sm:$0xff]
    %v57 = vld [vmem:[#allocation3 + $0x38] sm:$0xff]
    %vm58 = vcmask 130048
    %v59 = vsel %vm58, %v50, 0.0
    %v60 = vrot.slane %v59, 4
    %v61 = vadd.f32 %v59, %v60
    %v62 = vrot.slane %v61, 2
    %v63 = vadd.f32 %v61, %v62
    %v64 = vrot.slane %v63, 1
    %v65 = vadd.f32 %v63, %v64
    %v66 = vsel %vm58, %v51, 0.0
    %v67 = vrot.slane %v66, 4
    %v68 = vadd.f32 %v66, %v67
    %v69 = vrot.slane %v68, 2
    %v70 = vadd.f32 %v68, %v69
    %v71 = vrot.slane %v70, 1
    %v72 = vadd.f32 %v70, %v71
    %v73 = vsel %vm58, %v52, 0.0
    %v74 = vrot.slane %v73, 4
    %v75 = vadd.f32 %v73, %v74
    %v76 = vrot.slane %v75, 2
    %v77 = vadd.f32 %v75, %v76
    %v78 = vrot.slane %v77, 1
    %v79 = vadd.f32 %v77, %v78
    %v80 = vsel %vm58, %v53, 0.0
    %v81 = vrot.slane %v80, 4
    %v82 = vadd.f32 %v80, %v81
    %v83 = vrot.slane %v82, 2
    %v84 = vadd.f32 %v82, %v83
    %v85 = vrot.slane %v84, 1
    %v86 = vadd.f32 %v84, %v85
    %v87 = vsel %vm58, %v54, 0.0
    %v88 = vrot.slane %v87, 4
    %v89 = vadd.f32 %v87, %v88
    %v90 = vrot.slane %v89, 2
    %v91 = vadd.f32 %v89, %v90
    %v92 = vrot.slane %v91, 1
    %v93 = vadd.f32 %v91, %v92
    %v94 = vsel %vm58, %v55, 0.0
    %v95 = vrot.slane %v94, 4
    %v96 = vadd.f32 %v94, %v95
    %v97 = vrot.slane %v96, 2
    %v98 = vadd.f32 %v96, %v97
    %v99 = vrot.slane %v98, 1
    %v100 = vadd.f32 %v98, %v99
    %v101 = vsel %vm58, %v56, 0.0
    %v102 = vrot.slane %v101, 4
    %v103 = vadd.f32 %v101, %v102
    %v104 = vrot.slane %v103, 2
    %v105 = vadd.f32 %v103, %v104
    %v106 = vrot.slane %v105, 1
    %v107 = vadd.f32 %v105, %v106
    %v108 = vsel %vm58, %v57, 0.0
    %v109 = vrot.slane %v108, 4
    %v110 = vadd.f32 %v108, %v109
    %v111 = vrot.slane %v110, 2
    %v112 = vadd.f32 %v110, %v111
    %v113 = vrot.slane %v112, 1
    %v114 = vadd.f32 %v112, %v113
    %vm123 = vcmask 1041409
    %v124 = vsel %vm123, %v72, %v65
    %vm125 = vcmask 1042434
    %v126 = vsel %vm125, %v79, %v124
    %vm127 = vcmask 1043459
    %v128 = vsel %vm127, %v86, %v126
    %vm129 = vcmask 1044484
    %v130 = vsel %vm129, %v93, %v128
    %vm131 = vcmask 1045509
    %v132 = vsel %vm131, %v100, %v130
    %vm133 = vcmask 1046534
    %v134 = vsel %vm133, %v107, %v132
    %vm135 = vcmask 1047559
    %v136 = vsel %vm135, %v114, %v134
    %v138 = vadd.f32 %v49, %v136
    %139 = vst.msk [vmem:[#allocation2] sm:$0xff] %vm58, %v138
    // Predicated region
    $region26: #{tpu_custom_call.1} parent=1 // pred_check
      %p140 = pneg %p43
    $region27: #{tpu_custom_call.1} parent=1 // pred_check_branch
      %142 = sbr.rel (%p140) target = $region29
    $region28: #{tpu_custom_call.1} parent=1 // pred_region
      %v143 = vld [vmem:[#allocation2] sm:$0xff]
      %v144 = vld [vmem:[#allocation6] sm:$0xff]
      %v145 = vld [vmem:[#allocation6 + $0x8] sm:$0xff]
      %v146 = vld [vmem:[%s2] sm:$0x1]
      %v148 = vlaneseq
      %v149 = vshrl.u32 %v148, 7
      %v150 = vsub.s32 0, %v149
      %v151 = vrot.slane %v146, %v150
      %v154 = vsel %vm58, %v143, 0
      %156 = vmatprep.subr.mxu0 0.0
      %157 = vmatpush1.msra.mxu0 %v144
      %158 = vmatprep.subr.mxu0 0.0
      %159 = vmatpush1.msra.mxu0 %v145
      %160 = vmatprep.subr.mxu0 0.0
      %161 = vmatpush1.msra.mxu0 0.0
      %162 = vmatprep.subr.mxu0 0.0
      %163 = vmatpush1.msra.mxu0 0.0
      %164 = vmatprep.subr.mxu0 0.0
      %165 = vmatpush1.msra.mxu0 0.0
      %166 = vmatprep.subr.mxu0 0.0
      %167 = vmatpush1.msra.mxu0 0.0
      %168 = vmatprep.subr.mxu0 0.0
      %169 = vmatpush1.msra.mxu0 0.0
      %170 = vmatprep.subr.mxu0 0.0
      %171 = vmatpush1.msra.mxu0 0.0
      %172 = vmatprep.subr.mxu0 0.0
      %173 = vmatpush1.msra.mxu0 0.0
      %174 = vmatprep.subr.mxu0 0.0
      %175 = vmatpush1.msra.mxu0 0.0
      %176 = vmatprep.subr.mxu0 0.0
      %177 = vmatpush1.msra.mxu0 0.0
      %178 = vmatprep.subr.mxu0 0.0
      %179 = vmatpush1.msra.mxu0 0.0
      %180 = vmatprep.subr.mxu0 0.0
      %181 = vmatpush1.msra.mxu0 0.0
      %182 = vmatprep.subr.mxu0 0.0
      %183 = vmatpush1.msra.mxu0 0.0
      %184 = vmatprep.subr.mxu0 0.0
      %185 = vmatpush1.msra.mxu0 0.0
      %186 = vmatprep.subr.mxu0 0.0
      %187 = vmatpush1.msra.mxu0 0.0
      %188 = vmatprep.subr.mxu0 0.0
      %189 = vmatpush1.msra.mxu0 0.0
      %190 = vmatprep.subr.mxu0 0.0
      %191 = vmatpush1.msra.mxu0 0.0
      %192 = vmatprep.subr.mxu0 0.0
      %193 = vmatpush1.msra.mxu0 0.0
      %194 = vmatprep.subr.mxu0 0.0
      %195 = vmatpush1.msra.mxu0 0.0
      %196 = vmatprep.subr.mxu0 0.0
      %197 = vmatpush1.msra.mxu0 0.0
      %198 = vmatprep.subr.mxu0 0.0
      %199 = vmatpush1.msra.mxu0 0.0
      %200 = vmatprep.subr.mxu0 0.0
      %201 = vmatpush1.msra.mxu0 0.0
      %202 = vmatprep.subr.mxu0 0.0
      %203 = vmatpush1.msra.mxu0 0.0
      %204 = vmatprep.subr.mxu0 0.0
      %205 = vmatpush1.msra.mxu0 0.0
      %206 = vmatprep.subr.mxu0 0.0
      %207 = vmatpush1.msra.mxu0 0.0
      %208 = vmatprep.subr.mxu0 0.0
      %209 = vmatpush1.msra.mxu0 0.0
      %210 = vmatprep.subr.mxu0 0.0
      %211 = vmatpush1.msra.mxu0 0.0
      %212 = vmatprep.subr.mxu0 0.0
      %213 = vmatpush1.msra.mxu0 0.0
      %214 = vmatprep.subr.mxu0 0.0
      %215 = vmatpush1.msra.mxu0 0.0
      %216 = vmatprep.subr.mxu0 0.0
      %217 = vmatpush1.msra.mxu0 0.0
      %218 = vmatprep.subr.mxu0 0.0
      %219 = vmatpush1.msra.mxu0 0.0
      %220 = vmatprep.mubr.f32.mxu0 0.0
      %221 = vmatmul.mubr.f32.gmra.mrb[0].mxu0 %v154
      %v222 = vpop.f32.mrb[0].mxu0
      %v223 = vadd.f32 %v151, %v222
      %v224 = vpop.f32.mrb[0].mxu0
      %225 = vdwg.mxu0
      %226 = vst [vmem:[#allocation8] sm:$0xff] %v223
    $region29: #{tpu_custom_call.1} parent=1 // pred_fallthru
      _
    // Predicated region
    $region30: #{tpu_custom_call.1} parent=1 // pred_check
      _
    $region31: #{tpu_custom_call.1} parent=1 // pred_check_branch
      %228 = sbr.rel (0) target = $region33
    $region32: #{tpu_custom_call.1} parent=1 // pred_region
      %s230 = ssub.s32 128, 128
      %231 = vsyncadd [#allocation5], %s230
      %s233 = sshll.u32 [#allocation8], 4
      %s234 = int_to_ptr.vmem [resolvable:$true] %s233
      %236 = dma.vmem_to_hbm [thread:$0]  %s234, 128, %s3, [#allocation5]
    $region33: #{tpu_custom_call.1} parent=1 // pred_fallthru
      _
    // Predicated region
    $region34: #{tpu_custom_call.1} parent=1 // pred_check
      _
    $region35: #{tpu_custom_call.1} parent=1 // pred_check_branch
      %238 = sbr.rel (0) target = $region37
    $region36: #{tpu_custom_call.1} parent=1 // pred_region
      %239 = dma.done [#allocation5], 128
    $region37: #{tpu_custom_call.1} parent=1 // pred_fallthru
      _
    %240 = vsyncpa [#allocation4], 1
    %241 = vsyncpa [#allocation7], 1
    %242 = vsyncpa [#allocation5], 1

</llo_original>
